<compile_context>
chip_gen: v5e
topology: v5e:2x2
jax: 0.10.0
libtpu: 0.0.40
codegen_flags: <defaults>
</compile_context>

<pallas_src>
import functools

import jax
import jax.numpy as jnp
from jax.experimental import pallas as pl
from jax.experimental.pallas import tpu as pltpu


def _round_up(v, m):
    return ((v + m - 1) // m) * m


# ----------------------------------------------------------------------------
# Weight-resident path: grid = (rows,), W + bias live in VMEM for the whole
# kernel, one dot per row tile, epilogue fused inline.
# ----------------------------------------------------------------------------
def _wres_kernel(x_ref, w_ref, b_ref, o_ref, *, residual, act, mm_dtype):
    x = x_ref[...]                                   # f32 row tile (read once)
    y = jnp.dot(x.astype(mm_dtype), w_ref[...],
                preferred_element_type=jnp.float32)  # bf16 x bf16 -> f32 (MXU)
    y = y + b_ref[...]                               # bias broadcast (f32)
    # BatchNorm1d: module default bn=False -> nn.Identity (nothing to do).
    # Dropout: p=0 (and eval mode) -> identity.
    # TODO(synk): training-mode BatchNorm1d (batch stats) and dropout p>0 in
    #             training are not implemented; only the module defaults are.
    if residual:
        y = y + x.astype(jnp.float32)                # exact f32 residual
    if act:
        y = jnp.maximum(y, 0.0)                      # ReLU
    o_ref[...] = y.astype(o_ref.dtype)


def _call_resident(x, w_mm, b2, *, residual, act, out_dtype, row_tile,
                   mm_dtype):
    n, in_dim = x.shape
    hid_dim = w_mm.shape[1]
    x_item = x.dtype.itemsize
    o_item = jnp.dtype(out_dtype).itemsize
    w_bytes = w_mm.size * w_mm.dtype.itemsize

    tm = min(row_tile, _round_up(n, 8))
    if tm >= n:
        tm = n                       # single full-extent row block, no padding

    # Keep the double-buffered footprint well inside VMEM on every generation.
    budget = 40 * 1024 * 1024

    def footprint(t):
        return (2 * (t * in_dim * x_item + t * hid_dim * o_item)
                + 2 * w_bytes + 2 * hid_dim * 4)

    while tm > 8 and tm % 8 == 0 and footprint(tm) > budget:
        tm = max(8, _round_up(tm // 2, 8))

    n_p = _round_up(n, tm)
    x_in = x if n_p == n else jnp.pad(x, ((0, n_p - n), (0, 0)))

    kernel = functools.partial(_wres_kernel, residual=residual, act=act,
                               mm_dtype=mm_dtype)

    flops = 2 * n_p * in_dim * hid_dim
    bytes_accessed = (x_in.size * x_item + w_bytes + hid_dim * 4
                      + n_p * hid_dim * o_item)
    vmem_limit = int(min(56 * 1024 * 1024,
                         max(32 * 1024 * 1024, footprint(tm) * 5 // 4)))

    out_p = pl.pallas_call(
        kernel,
        out_shape=jax.ShapeDtypeStruct((n_p, hid_dim), out_dtype),
        grid_spec=pltpu.PrefetchScalarGridSpec(
            num_scalar_prefetch=0,
            grid=(n_p // tm,),
            in_specs=[
                pl.BlockSpec((tm, in_dim), lambda i: (i, 0)),       # x rows
                pl.BlockSpec((in_dim, hid_dim), lambda i: (0, 0)),  # resident W
                pl.BlockSpec((1, hid_dim), lambda i: (0, 0)),       # resident b
            ],
            out_specs=pl.BlockSpec((tm, hid_dim), lambda i: (i, 0)),
        ),
        compiler_params=pltpu.CompilerParams(
            dimension_semantics=("parallel",),
            vmem_limit_bytes=vmem_limit,
        ),
        cost_estimate=pl.CostEstimate(flops=flops, transcendentals=0,
                                      bytes_accessed=bytes_accessed),
    )(x_in, w_mm, b2)

    return out_p if n_p == n else out_p[:n]


# ----------------------------------------------------------------------------
# Streaming fallback: grid = (rows, hid-cols, K), K last with accumulation.
# ----------------------------------------------------------------------------
def _stream_kernel(x_ref, w_ref, b_ref, o_ref, *scratch,
                   residual, act, mm_dtype, use_acc):
    idx = 0
    if use_acc:
        acc_ref = scratch[idx]
        idx += 1
    else:
        acc_ref = o_ref                      # f32 output block is resident in k
    xres_ref = scratch[idx] if residual else None

    j = pl.program_id(1)
    k = pl.program_id(2)
    nk = pl.num_programs(2)

    @pl.when(k == 0)
    def _init():
        acc_ref[...] = jnp.zeros_like(acc_ref)

    x = x_ref[...]                           # f32 tile, cast on the VPU
    acc_ref[...] += jnp.dot(x.astype(mm_dtype), w_ref[...],
                            preferred_element_type=jnp.float32)

    if residual:
        # With tk == tn the x tile at k == j IS the residual tile; stash it so
        # x is only read once from HBM.
        @pl.when(k == j)
        def _stash():
            xres_ref[...] = x.astype(jnp.float32)

    @pl.when(k == nk - 1)
    def _epilogue():
        y = acc_ref[...].astype(jnp.float32) + b_ref[...]
        if residual:
            y = y + xres_ref[...]
        if act:
            y = jnp.maximum(y, 0.0)
        o_ref[...] = y.astype(o_ref.dtype)


def _call_streaming(x, w_mm, b2, *, residual, act, out_dtype,
                    row_tile, col_tile, k_tile, mm_dtype):
    n, in_dim = x.shape
    hid_dim = w_mm.shape[1]
    x_item = x.dtype.itemsize
    o_item = jnp.dtype(out_dtype).itemsize
    w_item = w_mm.dtype.itemsize

    tm = min(row_tile, _round_up(n, 8))
    tn = min(col_tile, _round_up(hid_dim, 128))
    tk = min(k_tile, _round_up(in_dim, 128))
    if residual:
        tk = tn = min(tk, tn)        # residual stash needs tk == tn

    n_p = _round_up(n, tm)
    hid_p = _round_up(hid_dim, tn)
    in_p = _round_up(in_dim, tk)

    x_in = x
    if (n_p, in_p) != (n, in_dim):
        x_in = jnp.pad(x, ((0, n_p - n), (0, in_p - in_dim)))
    if (in_p, hid_p) != (in_dim, hid_dim):
        w_mm = jnp.pad(w_mm, ((0, in_p - in_dim), (0, hid_p - hid_dim)))
    if hid_p != hid_dim:
        b2 = jnp.pad(b2, ((0, 0), (0, hid_p - hid_dim)))

    use_acc = jnp.dtype(out_dtype) != jnp.dtype(jnp.float32)

    scratch = []
    if use_acc:
        scratch.append(pltpu.VMEM((tm, tn), jnp.float32))
    if residual:
        scratch.append(pltpu.VMEM((tm, tn), jnp.float32))

    kernel = functools.partial(_stream_kernel, residual=residual, act=act,
                               mm_dtype=mm_dtype, use_acc=use_acc)

    flops = 2 * n_p * in_p * hid_p
    # Account for repeated streaming: x re-read per col tile, W per row tile.
    bytes_accessed = (x_in.size * x_item * (hid_p // tn)
                      + in_p * hid_p * w_item * (n_p // tm)
                      + hid_p * 4 + n_p * hid_p * o_item)
    footprint = (2 * (tm * tk * x_item + tk * tn * w_item + tm * tn * o_item)
                 + 2 * tn * 4
                 + (tm * tn * 4 if use_acc else 0)
                 + (tm * tn * 4 if residual else 0))
    vmem_limit = int(min(56 * 1024 * 1024,
                         max(32 * 1024 * 1024, footprint * 2)))

    out_p = pl.pallas_call(
        kernel,
        out_shape=jax.ShapeDtypeStruct((n_p, hid_p), out_dtype),
        grid_spec=pltpu.PrefetchScalarGridSpec(
            num_scalar_prefetch=0,
            grid=(n_p // tm, hid_p // tn, in_p // tk),
            in_specs=[
                pl.BlockSpec((tm, tk), lambda i, j, k: (i, k)),   # x tile (f32)
                pl.BlockSpec((tk, tn), lambda i, j, k: (k, j)),   # W tile
                pl.BlockSpec((1, tn), lambda i, j, k: (0, j)),    # bias tile
            ],
            out_specs=pl.BlockSpec((tm, tn), lambda i, j, k: (i, j)),
            scratch_shapes=scratch,
        ),
        compiler_params=pltpu.CompilerParams(
            dimension_semantics=("parallel", "parallel", "arbitrary"),
            vmem_limit_bytes=vmem_limit,
        ),
        cost_estimate=pl.CostEstimate(flops=flops, transcendentals=0,
                                      bytes_accessed=bytes_accessed),
    )(x_in, w_mm, b2)

    if (n_p, hid_p) != (n, hid_dim):
        out_p = out_p[:n, :hid_dim]
    return out_p


# ----------------------------------------------------------------------------
# Public wrapper.
# ----------------------------------------------------------------------------
def linear_block(x, w, b, *, residual=False, act=True,
                 bn=False, dropout=0.0, training=False,
                 matmul_dtype=jnp.bfloat16, out_dtype=None,
                 row_tile=512, col_tile=512, k_tile=512,
                 weight_resident_max_bytes=16 * 1024 * 1024):
    """Pallas-backed LinearBlock forward.

    x: [N, in_dim] float32
    w: [in_dim, hid_dim] (transposed PyTorch nn.Linear weight)
    b: [hid_dim]

    Note: matmul operands are computed in `matmul_dtype` (bf16 by default,
    an accuracy/speed tradeoff); pass matmul_dtype=jnp.float32 for exactness.
    Set out_dtype=jnp.bfloat16 to halve output writeback when the consumer is
    another bf16 matmul.
    """
    if bn:
        # TODO(synk): BatchNorm1d (bn=True), incl. training-mode batch stats.
        raise NotImplementedError("bn=True is not implemented")
    if dropout and training:
        # TODO(synk): dropout p>0 in training mode.
        raise NotImplementedError("dropout>0 in training is not implemented")

    n, in_dim = x.shape
    in_dim_w, hid_dim = w.shape
    assert in_dim == in_dim_w
    if residual:
        assert in_dim == hid_dim, "residual add requires in_dim == hid_dim"

    out_dtype = x.dtype if out_dtype is None else out_dtype
    mm_dt = jnp.dtype(matmul_dtype)

    # W is small relative to x: casting it once in the wrapper is cheap and
    # halves its resident/streamed footprint.  x is NOT copied/cast here.
    w_mm = w if w.dtype == mm_dt else w.astype(mm_dt)
    b2 = b.astype(jnp.float32).reshape(1, hid_dim)

    w_bytes = in_dim * hid_dim * mm_dt.itemsize
    if w_bytes <= weight_resident_max_bytes:
        return _call_resident(x, w_mm, b2, residual=residual, act=act,
                              out_dtype=out_dtype, row_tile=row_tile,
                              mm_dtype=mm_dt)
    return _call_streaming(x, w_mm, b2, residual=residual, act=act,
                           out_dtype=out_dtype, row_tile=row_tile,
                           col_tile=col_tile, k_tile=k_tile, mm_dtype=mm_dt)


def linear_block_ref(x, w, b, *, residual=False, act=True,
                     matmul_dtype=jnp.float32):
    xm = x.astype(matmul_dtype).astype(jnp.float32)
    wm = w.astype(matmul_dtype).astype(jnp.float32)
    y = xm @ wm + b[None, :].astype(jnp.float32)
    if residual:
        y = x + y
    if act:
        y = jnp.maximum(y, 0.0)
    return y.astype(x.dtype)


if __name__ == "__main__":
    key = jax.random.PRNGKey(0)
    kx, kw, kb, kw2, kb2, kx3, kw3, kb3 = jax.random.split(key, 8)

    # 1) Module-default config, small shapes (weight-resident fast path).
    N, IN_DIM, HID_DIM = 16, 32, 64
    x = jax.random.normal(kx, (N, IN_DIM), dtype=jnp.float32)
    bound = 1.0 / (IN_DIM ** 0.5)
    w = jax.random.uniform(kw, (IN_DIM, HID_DIM), jnp.float32, -bound, bound)
    b = jax.random.uniform(kb, (HID_DIM,), jnp.float32, -bound, bound)

    out = jax.block_until_ready(linear_block(x, w, b, residual=False, act=True))
    ref = linear_block_ref(x, w, b, residual=False, act=True,
                           matmul_dtype=jnp.bfloat16)
    assert out.shape == (N, HID_DIM)
    assert jnp.allclose(out, ref, atol=2e-3, rtol=2e-3), "mismatch vs reference"

    # 2) Residual path (requires in_dim == hid_dim), weight-resident.
    D = 32
    x2 = jax.random.normal(kx, (N, D), dtype=jnp.float32)
    bound2 = 1.0 / (D ** 0.5)
    w2 = jax.random.uniform(kw2, (D, D), jnp.float32, -bound2, bound2)
    b2 = jax.random.uniform(kb2, (D,), jnp.float32, -bound2, bound2)

    out2 = jax.block_until_ready(linear_block(x2, w2, b2, residual=True, act=True))
    ref2 = linear_block_ref(x2, w2, b2, residual=True, act=True,
                            matmul_dtype=jnp.bfloat16)
    assert out2.shape == (N, D)
    assert jnp.allclose(out2, ref2, atol=2e-3, rtol=2e-3), "residual mismatch"

    # 3) Streaming fallback exercised explicitly (forced, small tiles so the
    #    (i, j, k) grid, residual stash and output-resident accumulation run).
    N3, D3 = 256, 256
    x3 = jax.random.normal(kx3, (N3, D3), dtype=jnp.float32)
    bound3 = 1.0 / (D3 ** 0.5)
    w3 = jax.random.uniform(kw3, (D3, D3), jnp.float32, -bound3, bound3)
    b3 = jax.random.uniform(kb3, (D3,), jnp.float32, -bound3, bound3)

    out3 = jax.block_until_ready(
        linear_block(x3, w3, b3, residual=True, act=True,
                     row_tile=128, col_tile=128, k_tile=128,
                     weight_resident_max_bytes=0))
    ref3 = linear_block_ref(x3, w3, b3, residual=True, act=True,
                            matmul_dtype=jnp.bfloat16)
    assert out3.shape == (N3, D3)
    assert jnp.allclose(out3, ref3, atol=5e-3, rtol=5e-3), "streaming mismatch"

    print("KERNEL_OK")
</pallas_src>

<mosaic_0001>
module attributes {stable_mosaic.version = 11 : i64} {
  func.func @_wres_kernel(%arg0: i32, %arg1: memref<16x32xf32, #tpu.memory_space<vmem>>, %arg2: memref<32x64xbf16, #tpu.memory_space<vmem>>, %arg3: memref<1x64xf32, #tpu.memory_space<vmem>>, %arg4: memref<16x64xf32, #tpu.memory_space<vmem>>) attributes {dimension_semantics = [#tpu.dimension_semantics<parallel>], iteration_bounds = array<i64: 1>, scalar_prefetch = 0 : i64, scratch_operands = 0 : i64, tpu.core_type = #tpu.core_type<tc>, window_params = [{transform_indices = @transform_0, window_bounds = array<i64: 16, 32>}, {pipeline_mode = #tpu.pipeline_mode<synchronous>, transform_indices = @transform_1, window_bounds = array<i64: 32, 64>}, {pipeline_mode = #tpu.pipeline_mode<synchronous>, transform_indices = @transform_2, window_bounds = array<i64: 1, 64>}, {transform_indices = @transform_3, window_bounds = array<i64: 16, 64>}]} {
    %c0 = arith.constant 0 : index
    %c0_0 = arith.constant 0 : index
    %0 = vector.load %arg1[%c0, %c0_0] : memref<16x32xf32, #tpu.memory_space<vmem>>, vector<16x32xf32>
    %1 = arith.truncf %0 : vector<16x32xf32> to vector<16x32xbf16>
    %c0_1 = arith.constant 0 : index
    %c0_2 = arith.constant 0 : index
    %2 = vector.load %arg2[%c0_1, %c0_2] : memref<32x64xbf16, #tpu.memory_space<vmem>>, vector<32x64xbf16>
    %cst = arith.constant dense<0.000000e+00> : vector<16x64xf32>
    %3 = tpu.matmul %1, %2, %cst {dimension_numbers = #tpu.dot_dimension_numbers<[1], [0], [0], [1], [0, 0, 1, 1], [], []>} : vector<16x32xbf16>, vector<32x64xbf16>, vector<16x64xf32> -> vector<16x64xf32>
    %c0_3 = arith.constant 0 : index
    %c0_4 = arith.constant 0 : index
    %4 = vector.load %arg3[%c0_3, %c0_4] : memref<1x64xf32, #tpu.memory_space<vmem>>, vector<1x64xf32>
    %5 = vector.broadcast %4 : vector<1x64xf32> to vector<16x64xf32>
    %6 = arith.addf %3, %5 : vector<16x64xf32>
    %cst_5 = arith.constant 0.000000e+00 : f32
    %7 = vector.broadcast %cst_5 : f32 to vector<16x64xf32>
    %8 = arith.maximumf %6, %7 : vector<16x64xf32>
    %c0_6 = arith.constant 0 : index
    %c0_7 = arith.constant 0 : index
    %9 = vector.load %arg4[%c0_6, %c0_7] : memref<16x64xf32, #tpu.memory_space<vmem>>, vector<16x64xf32>
    tpu.vector_store %arg4[%c0_6, %c0_7], %8 {strides = array<i32>} : memref<16x64xf32, #tpu.memory_space<vmem>>, vector<16x64xf32>,
    return
  }
  func.func @transform_0(%arg0: i32) -> (i32, i32) {
    %c0_i32 = arith.constant 0 : i32
    %c0_i32_0 = arith.constant 0 : i32
    return %arg0, %c0_i32 : i32, i32
  }
  func.func @transform_1(%arg0: i32) -> (i32, i32) {
    %c0_i32 = arith.constant 0 : i32
    %c0_i32_0 = arith.constant 0 : i32
    %c0_i32_1 = arith.constant 0 : i32
    return %c0_i32, %c0_i32_0 : i32, i32
  }
  func.func @transform_2(%arg0: i32) -> (i32, i32) {
    %c0_i32 = arith.constant 0 : i32
    %c0_i32_0 = arith.constant 0 : i32
    %c0_i32_1 = arith.constant 0 : i32
    return %c0_i32, %c0_i32_0 : i32, i32
  }
  func.func @transform_3(%arg0: i32) -> (i32, i32) {
    %c0_i32 = arith.constant 0 : i32
    %c0_i32_0 = arith.constant 0 : i32
    return %arg0, %c0_i32 : i32, i32
  }
}

</mosaic_0001>

<llo_original>
// kernel: tpu_custom_call.1
$region0: #{tpu_custom_call.1}
  #allocation0 [shape = 'u32[]', space=smem, size = 0x4, offset = 0x4, fixed_abs, tag = 'smem constant byte address 0x4 - core index']
  #allocation1 [shape = 'u32[72,128]{1,0:T(1,128)}', space=vmem, size = 0x9000, scoped, tag = 'internal scratch']
  %s0 = inlined_call_operand.hbm [shape: f32[16,32], index: 0, kind: input, shape index: {}]
  %s1 = inlined_call_operand.hbm [shape: bf16[32,64], index: 1, kind: input, shape index: {}]
  %s2 = inlined_call_operand.vmem [shape: f32[1,64], index: 2, kind: input, shape index: {}]
  %s3 = inlined_call_operand.hbm [shape: f32[16,64], index: 3, kind: output, shape index: {}]
  %s4 = sld [smem:[#allocation0]]
  $region30: #{tpu_custom_call.1} parent=0
    _
  %s6 = ssub.s32 1, %s4
  %s7 = scalar_select 0, %s6, %s4
  $region1: #{tpu_custom_call.1} parent=0
    #allocation2 [shape = 'u8[8192]{0}', space=vmem, size = 0x2000, scoped, tag = 'input window, operand 0, single buffered']
    #allocation3 [shape = 's32[1]{0}', space=sflag, size = 0x4, scoped, tag = 'scoped memory for tpu_custom_call.1']
    #allocation4 [shape = 's32[1]{0}', space=sflag, size = 0x4, scoped, tag = 'scoped memory for tpu_custom_call.1']
    #allocation5 [shape = 'u8[8192]{0}', space=vmem, size = 0x2000, scoped, tag = 'input window, operand 1, single buffered']
    #allocation6 [shape = 's32[1]{0}', space=sflag, size = 0x4, scoped, tag = 'scoped memory for tpu_custom_call.1']
    #allocation7 [shape = 'u8[8192]{0}', space=vmem, size = 0x2000, scoped, tag = 'output window, operand 0, single buffered']
    %8 = vsyncpa [#allocation3], 0
    %9 = vsyncpa [#allocation6], 0
    %10 = vsyncpa [#allocation4], 0
    // Predicated region
    $region2: #{tpu_custom_call.1} parent=1 // pred_check
      _
    $region3: #{tpu_custom_call.1} parent=1 // pred_check_branch
      %12 = sbr.rel (0) target = $region5
    $region4: #{tpu_custom_call.1} parent=1 // pred_region
      %14 = vsyncadd [#allocation3], 0
      %s15 = sshll.u32 %s0, 4
      %s16 = int_to_ptr.hbm [resolvable:$true] %s15
      %s17 = sshll.u32 [#allocation2], 4
      %s18 = int_to_ptr.vmem [resolvable:$true] %s17
      %23 = dma.hbm_to_vmem [thread:$0]  %s16, 256, %s18, [#allocation3], 128, 128, 8
    $region5: #{tpu_custom_call.1} parent=1 // pred_fallthru
      _
    // Predicated region
    $region6: #{tpu_custom_call.1} parent=1 // pred_check
      _
    $region7: #{tpu_custom_call.1} parent=1 // pred_check_branch
      %25 = sbr.rel (0) target = $region9
    $region8: #{tpu_custom_call.1} parent=1 // pred_region
      %27 = vsyncadd [#allocation6], 0
      %s28 = sshll.u32 %s1, 4
      %s29 = int_to_ptr.hbm [resolvable:$true] %s28
      %s30 = sshll.u32 [#allocation5], 4
      %s31 = int_to_ptr.vmem [resolvable:$true] %s30
      %36 = dma.hbm_to_vmem [thread:$0]  %s29, 256, %s31, [#allocation6], 64, 64, 4
    $region9: #{tpu_custom_call.1} parent=1 // pred_fallthru
      _
    // Predicated region
    $region10: #{tpu_custom_call.1} parent=1 // pred_check
      _
    $region11: #{tpu_custom_call.1} parent=1 // pred_check_branch
      %38 = sbr.rel (0) target = $region13
    $region12: #{tpu_custom_call.1} parent=1 // pred_region
      _
    $region13: #{tpu_custom_call.1} parent=1 // pred_fallthru
      _
    // Predicated region
    $region14: #{tpu_custom_call.1} parent=1 // pred_check
      _
    $region15: #{tpu_custom_call.1} parent=1 // pred_check_branch
      %40 = sbr.rel (0) target = $region17
    $region16: #{tpu_custom_call.1} parent=1 // pred_region
      %42 = dma.done [#allocation3], 256
    $region17: #{tpu_custom_call.1} parent=1 // pred_fallthru
      _
    // Predicated region
    $region18: #{tpu_custom_call.1} parent=1 // pred_check
      _
    $region19: #{tpu_custom_call.1} parent=1 // pred_check_branch
      %44 = sbr.rel (0) target = $region21
    $region20: #{tpu_custom_call.1} parent=1 // pred_region
      %46 = dma.done [#allocation6], 256
    $region21: #{tpu_custom_call.1} parent=1 // pred_fallthru
      _
    %v48 = vld [vmem:[#allocation2] sm:$0xff]
    %v49 = vld [vmem:[#allocation2 + $0x8] sm:$0xff]
    %v50 = vpack.c.bf16 %v49, %v48
    %v51 = vld [vmem:[#allocation5] sm:$0xf]
    %v52 = vld [vmem:[#allocation5 + $0x4] sm:$0xf]
    %v53 = vld [vmem:[#allocation5 + $0x8] sm:$0xf]
    %v54 = vld [vmem:[#allocation5 + $0xc] sm:$0xf]
    %v55 = vld [vmem:[%s2] sm:$0x1]
    %v57 = vperm.slane %v55, 0
    %v63 = vunpack.c.l.b16 %v51
    %v64 = vunpack.c.l.b16 %v52
    %v65 = vunpack.c.l.b16 %v53
    %v66 = vunpack.c.l.b16 %v54
    %v67 = vpack.c.b16 %v64, %v63
    %v68 = vpack.c.b16 %v66, %v65
    %vm71 = vcmask 261120
    %v73 = vsel %vm71, %v50, 0
    %75 = vmatpush.bf16.msra.mxu0 0
    %76 = vmatpush.bf16.msra.mxu0 0
    %77 = vmatpush.bf16.msra.mxu0 0
    %78 = vmatpush.bf16.msra.mxu0 0
    %79 = vmatpush.bf16.msra.mxu0 0
    %80 = vmatpush.bf16.msra.mxu0 0
    %81 = vmatpush.bf16.msra.mxu0 %v68
    %82 = vmatpush.bf16.msra.mxu0 %v67
    %83 = vmatmul.bf16.gmra.mxu0 %v73
    %v84 = vpop.f32.mrf.mxu0
    %v85 = vadd.f32 %v57, %v84
    %v86 = vpop.f32.mrf.mxu0
    %v87 = vadd.f32 %v57, %v86
    %88 = vdwg.mxu0
    %v89 = vmax.f32 %v85, 0.0
    %v90 = vmax.f32 %v87, 0.0
    %vm91 = vcmask 523264
    %92 = vst.msk [vmem:[#allocation7] sm:$0xff] %vm91, %v89
    %93 = vst.msk [vmem:[#allocation7 + $0x8] sm:$0xff] %vm91, %v90
    // Predicated region
    $region22: #{tpu_custom_call.1} parent=1 // pred_check
      _
    $region23: #{tpu_custom_call.1} parent=1 // pred_check_branch
      %95 = sbr.rel (0) target = $region25
    $region24: #{tpu_custom_call.1} parent=1 // pred_region
      %97 = vsyncadd [#allocation4], 0
      %s98 = sshll.u32 [#allocation7], 4
      %s99 = int_to_ptr.vmem [resolvable:$true] %s98
      %s100 = sshll.u32 %s3, 4
      %s101 = int_to_ptr.hbm [resolvable:$true] %s100
      %106 = dma.vmem_to_hbm [thread:$0]  %s99, 256, %s101, [#allocation4], 128, 128, 8
    $region25: #{tpu_custom_call.1} parent=1 // pred_fallthru
      _
    // Predicated region
    $region26: #{tpu_custom_call.1} parent=1 // pred_check
      _
    $region27: #{tpu_custom_call.1} parent=1 // pred_check_branch
      %108 = sbr.rel (0) target = $region29
    $region28: #{tpu_custom_call.1} parent=1 // pred_region
      %110 = dma.done [#allocation4], 256
    $region29: #{tpu_custom_call.1} parent=1 // pred_fallthru
      _
    %111 = vsyncpa [#allocation3], 1
    %112 = vsyncpa [#allocation6], 1
    %113 = vsyncpa [#allocation4], 1

</llo_original>
